<compile_context>
chip_gen: v7x
topology: tpu7x:2x2x1
jax: 0.10.0
libtpu: 0.0.40
codegen_flags: <defaults>
</compile_context>

<pallas_src>
import jax
import jax.numpy as jnp
import numpy as np
from jax.experimental import pallas as pl
from jax.experimental.pallas import tpu as pltpu

EPSILON = 1e-4  # self.epsilon


def _round_up(x, m):
    return ((x + m - 1) // m) * m


def _pick_batch_tile(B, HW, Cf, budget_bytes=2 << 20):
    """Largest divisor of B whose z-tile fits the budget (keeps reshapes 8-aligned)."""
    if HW % 8 != 0:
        return 1  # avoid sublane-splitting reshape when HW is not 8-aligned
    per_elem = HW * Cf * 4
    bt = 1
    for cand in range(1, B + 1):
        if B % cand == 0 and cand * per_elem <= budget_bytes:
            bt = cand
    return bt


# ---------------------------------------------------------------------------
# Single fused kernel
# ---------------------------------------------------------------------------
def _fused_forward_kernel(z_ref, w_ref, b_ref, proto_ref, p2_ref, pp_ref,
                          gsum_ref, logits_ref, min_ref, xdet_ref,
                          min_acc, avg_acc):
    # z_ref:     (Bt, HW, Cf)      batch tile of backbone features (channels-last)
    # w_ref:     (Cf, D)           add-on 1x1 conv weight (transposed)
    # b_ref:     (1, D)            add-on bias
    # proto_ref: (D, P_pad)        prototype vectors (transposed, zero-padded)
    # p2_ref:    (1, P_pad)        sum_d prototype^2
    # pp_ref:    (P_pad, CN_pad)   softmaxed proto_presence, flattened + padded
    # gsum_ref:  (CN_pad, C_pad)   group-sum matrix (sums descriptive slots per class)
    # outputs:   logits (B_pad, C_pad), min_d (B_pad, P_pad), x_det (B_pad, P_pad)
    # scratch:   min_acc/avg_acc (B_pad, P_pad) persistent accumulators
    t = pl.program_id(0)
    nb = pl.num_programs(0)
    bt, hw, cf = z_ref.shape
    p_pad = proto_ref.shape[1]

    @pl.when(t == 0)
    def _init():
        min_acc[...] = jnp.zeros_like(min_acc)
        avg_acc[...] = jnp.zeros_like(avg_acc)

    # --- add_on: 1x1 conv + sigmoid, row-fused over the batch tile (M = bt*hw)
    z2 = z_ref[...].reshape(bt * hw, cf)
    f = jax.nn.sigmoid(
        jnp.dot(z2, w_ref[...], preferred_element_type=jnp.float32) + b_ref[...])

    # --- L2 "prototype convolution":  relu(||f||^2 - 2 f.p + ||p||^2)
    x2 = jnp.sum(f * f, axis=-1, keepdims=True)                         # (bt*hw, 1)
    xp = jnp.dot(f, proto_ref[...], preferred_element_type=jnp.float32)  # (bt*hw, P)
    dist = jnp.maximum(x2 - 2.0 * xp + p2_ref[...], 0.0)
    dist = dist.reshape(bt, hw, p_pad)

    # --- spatial min / avg pooling, accumulated into persistent VMEM scratch
    row = pl.multiple_of(t * bt, bt)
    min_acc[pl.ds(row, bt), :] = jnp.min(dist, axis=1)
    avg_acc[pl.ds(row, bt), :] = jnp.mean(dist, axis=1)

    # --- epilogue on the final grid step: mixing, similarity, reductions
    @pl.when(t == nb - 1)
    def _epilogue():
        def sim(d):  # distance_2_similarity, 'log'
            return jnp.log((d + 1.0) / (d + EPSILON))

        md = min_acc[...]                                                # (B_pad, P_pad)
        ad = avg_acc[...]
        mixed_min = jnp.dot(md, pp_ref[...], preferred_element_type=jnp.float32)
        mixed_avg = jnp.dot(ad, pp_ref[...], preferred_element_type=jnp.float32)
        diff = sim(mixed_min) - sim(mixed_avg)                           # (B_pad, CN_pad)
        logits_ref[...] = jnp.dot(diff, gsum_ref[...],
                                  preferred_element_type=jnp.float32)    # (B_pad, C_pad)
        min_ref[...] = md
        # clamp: argument is mathematically >= 0 but can round slightly negative
        xdet_ref[...] = jnp.sqrt(jnp.maximum(sim(md) - sim(ad), 0.0)) - 1.0


# ---------------------------------------------------------------------------
# Wrapper: PrototypeChooser.forward(x, gumbel_scale=0)
# ---------------------------------------------------------------------------
def prototype_chooser_forward(x, params, *, channels_last=False):
    w_add = params["w_add"]            # (Cf, D)
    b_add = params["b_add"]            # (1, D)
    protos = params["protos"]          # (D, P)
    pp_raw = params["proto_presence"]  # (C, P, N)

    D, P = protos.shape
    C, _, N = pp_raw.shape

    if channels_last:                   # x: (B, H, W, Cf)  -> free reshape
        B, H, W, Cf = x.shape
        z = x.reshape(B, H * W, Cf)
    else:                               # x: (B, Cf, H, W)  (PyTorch NCHW)
        B, Cf, H, W = x.shape
        # TODO(synk): feed channels-last backbone features to skip this HBM pass.
        z = jnp.transpose(x.reshape(B, Cf, H * W), (0, 2, 1))
    HW = H * W

    # ---- lane-dense padding ----
    P_pad = _round_up(P, 128)
    CN_pad = _round_up(C * N, 128)
    C_pad = _round_up(C, 128)
    B_pad = _round_up(B, 8)

    protos_pad = jnp.pad(protos, ((0, 0), (0, P_pad - P)))
    p2_pad = jnp.sum(protos_pad * protos_pad, axis=0, keepdims=True)      # (1, P_pad)

    # proto_presence = softmax(dim=1)  (gumbel_scale == 0 path); tiny -> XLA.
    pp_soft = jax.nn.softmax(pp_raw, axis=1)                              # (C, P, N)
    pp_flat = jnp.transpose(pp_soft, (1, 0, 2)).reshape(P, C * N)         # (P, C*N)
    pp_flat_pad = jnp.pad(pp_flat, ((0, P_pad - P), (0, CN_pad - C * N)))

    # group-sum matrix: column c sums the descriptive slots of class c
    gsum = jnp.repeat(jnp.eye(C, dtype=jnp.float32), N, axis=0)           # (C*N, C)
    gsum_pad = jnp.pad(gsum, ((0, CN_pad - C * N), (0, C_pad - C)))

    Bt = _pick_batch_tile(B, HW, Cf)
    nb = B // Bt

    logits_pad, min_pad, xdet_pad = pl.pallas_call(
        _fused_forward_kernel,
        grid=(nb,),
        in_specs=[
            pl.BlockSpec((Bt, HW, Cf), lambda t: (t, 0, 0)),
            pl.BlockSpec((Cf, D), lambda t: (0, 0)),
            pl.BlockSpec((1, D), lambda t: (0, 0)),
            pl.BlockSpec((D, P_pad), lambda t: (0, 0)),
            pl.BlockSpec((1, P_pad), lambda t: (0, 0)),
            pl.BlockSpec((P_pad, CN_pad), lambda t: (0, 0)),
            pl.BlockSpec((CN_pad, C_pad), lambda t: (0, 0)),
        ],
        out_specs=[
            pl.BlockSpec((B_pad, C_pad), lambda t: (0, 0)),
            pl.BlockSpec((B_pad, P_pad), lambda t: (0, 0)),
            pl.BlockSpec((B_pad, P_pad), lambda t: (0, 0)),
        ],
        out_shape=[
            jax.ShapeDtypeStruct((B_pad, C_pad), jnp.float32),
            jax.ShapeDtypeStruct((B_pad, P_pad), jnp.float32),
            jax.ShapeDtypeStruct((B_pad, P_pad), jnp.float32),
        ],
        scratch_shapes=[
            pltpu.VMEM((B_pad, P_pad), jnp.float32),
            pltpu.VMEM((B_pad, P_pad), jnp.float32),
        ],
        compiler_params=pltpu.CompilerParams(
            # "arbitrary": the last-step epilogue reads the full accumulator;
            # on v7x a "parallel" batch axis would split it across TensorCores.
            dimension_semantics=("arbitrary",),
            vmem_limit_bytes=32 * 1024 * 1024,
        ),
    )(z, w_add, b_add, protos_pad, p2_pad, pp_flat_pad, gsum_pad)

    logits = logits_pad[:B, :C]
    min_d = min_pad[:B, :P]
    x_det = xdet_pad[:B, :P]

    # returns match torch: (x, min_distances, proto_presence, x_det.flatten(1))
    return logits, min_d, pp_soft, x_det


# ---------------------------------------------------------------------------
# Pure-JAX reference (for correctness check)
# ---------------------------------------------------------------------------
def reference_forward(x_nchw, params):
    w_add, b_add = params["w_add"], params["b_add"]
    protos, pp_raw = params["protos"], params["proto_presence"]
    B, Cf, H, W = x_nchw.shape
    z = jnp.transpose(x_nchw.reshape(B, Cf, H * W), (0, 2, 1))
    f = jax.nn.sigmoid(jnp.einsum("bsc,cd->bsd", z, w_add,
                                  precision=jax.lax.Precision.HIGHEST) + b_add)
    p2 = jnp.sum(protos * protos, axis=0)
    x2 = jnp.sum(f * f, axis=-1, keepdims=True)
    xp = jnp.einsum("bsd,dp->bsp", f, protos, precision=jax.lax.Precision.HIGHEST)
    dist = jnp.maximum(x2 - 2.0 * xp + p2, 0.0)
    min_d, avg_d = dist.min(axis=1), dist.mean(axis=1)
    pp = jax.nn.softmax(pp_raw, axis=1)
    sim = lambda d: jnp.log((d + 1.0) / (d + EPSILON))
    mm = jnp.einsum("bp,cpn->bcn", min_d, pp, precision=jax.lax.Precision.HIGHEST)
    ma = jnp.einsum("bp,cpn->bcn", avg_d, pp, precision=jax.lax.Precision.HIGHEST)
    logits = (sim(mm) - sim(ma)).sum(-1)
    # same clamp as the kernel (guards rounding-induced NaN; arg is >= 0 exactly)
    x_det = jnp.sqrt(jnp.maximum(sim(min_d) - sim(avg_d), 0.0)) - 1.0
    return logits, min_d, pp, x_det.reshape(B, -1)


if __name__ == "__main__":
    # Small shapes consistent with the module:
    #   backbone feature channels Cf, proto_depth D, num_prototypes P,
    #   num_classes C, num_descriptive N.
    B, Cf, H, W = 2, 64, 8, 8
    D, P, C, N = 32, 16, 4, 4

    key = jax.random.PRNGKey(0)
    k_x, k_pp, k_w, k_pv = jax.random.split(key, 4)

    x = jax.random.normal(k_x, (B, Cf, H, W), dtype=jnp.float32)

    # deterministic parameter init (shapes from __init__)
    xavier_std = float(np.sqrt(2.0 / (P + N)))
    proto_presence = xavier_std * jax.random.normal(k_pp, (C, P, N), dtype=jnp.float32)
    kaiming_std = float(np.sqrt(2.0 / D))            # kaiming_normal, fan_out
    w_add = kaiming_std * jax.random.normal(k_w, (Cf, D), dtype=jnp.float32)
    b_add = jnp.zeros((1, D), dtype=jnp.float32)     # constant_(bias, 0)
    protos = jax.random.uniform(k_pv, (D, P), dtype=jnp.float32)  # torch.rand

    params = dict(w_add=w_add, b_add=b_add, protos=protos,
                  proto_presence=proto_presence)

    outs = jax.jit(prototype_chooser_forward)(x, params)
    outs = jax.block_until_ready(outs)
    refs = reference_forward(x, params)

    for o, r in zip(outs, refs):
        np.testing.assert_allclose(np.asarray(o), np.asarray(r),
                                   rtol=2e-2, atol=2e-2)

    print("KERNEL_OK")
</pallas_src>

<mosaic_0001>
module attributes {stable_mosaic.version = 11 : i64} {
  func.func @_fused_forward_kernel(%arg0: i32, %arg1: memref<2x64x64xf32, #tpu.memory_space<vmem>>, %arg2: memref<64x32xf32, #tpu.memory_space<vmem>>, %arg3: memref<1x32xf32, #tpu.memory_space<vmem>>, %arg4: memref<32x128xf32, #tpu.memory_space<vmem>>, %arg5: memref<1x128xf32, #tpu.memory_space<vmem>>, %arg6: memref<128x128xf32, #tpu.memory_space<vmem>>, %arg7: memref<128x128xf32, #tpu.memory_space<vmem>>, %arg8: memref<8x128xf32, #tpu.memory_space<vmem>>, %arg9: memref<8x128xf32, #tpu.memory_space<vmem>>, %arg10: memref<8x128xf32, #tpu.memory_space<vmem>>, %arg11: memref<8x128xf32, #tpu.memory_space<vmem>>, %arg12: memref<8x128xf32, #tpu.memory_space<vmem>>) attributes {dimension_semantics = [#tpu.dimension_semantics<arbitrary>], iteration_bounds = array<i64: 1>, scalar_prefetch = 0 : i64, scratch_operands = 2 : i64, tpu.core_type = #tpu.core_type<tc>, window_params = [{transform_indices = @transform_0, window_bounds = array<i64: 2, 64, 64>}, {pipeline_mode = #tpu.pipeline_mode<synchronous>, transform_indices = @transform_1, window_bounds = array<i64: 64, 32>}, {pipeline_mode = #tpu.pipeline_mode<synchronous>, transform_indices = @transform_2, window_bounds = array<i64: 1, 32>}, {pipeline_mode = #tpu.pipeline_mode<synchronous>, transform_indices = @transform_3, window_bounds = array<i64: 32, 128>}, {pipeline_mode = #tpu.pipeline_mode<synchronous>, transform_indices = @transform_4, window_bounds = array<i64: 1, 128>}, {pipeline_mode = #tpu.pipeline_mode<synchronous>, transform_indices = @transform_5, window_bounds = array<i64: 128, 128>}, {pipeline_mode = #tpu.pipeline_mode<synchronous>, transform_indices = @transform_6, window_bounds = array<i64: 128, 128>}, {pipeline_mode = #tpu.pipeline_mode<synchronous>, transform_indices = @transform_7, window_bounds = array<i64: 8, 128>}, {pipeline_mode = #tpu.pipeline_mode<synchronous>, transform_indices = @transform_8, window_bounds = array<i64: 8, 128>}, {pipeline_mode = #tpu.pipeline_mode<synchronous>, transform_indices = @transform_9, window_bounds = array<i64: 8, 128>}]} {
    %c0_i32 = arith.constant 0 : i32
    %0 = arith.cmpi eq, %arg0, %c0_i32 : i32
    %1 = arith.extui %0 : i1 to i32
    %c0_i32_0 = arith.constant 0 : i32
    %2 = arith.cmpi ne, %1, %c0_i32_0 : i32
    scf.if %2 {
      %cst_23 = arith.constant 0.000000e+00 : f32
      %43 = vector.broadcast %cst_23 : f32 to vector<8x128xf32>
      %c0_24 = arith.constant 0 : index
      %c0_25 = arith.constant 0 : index
      %44 = vector.load %arg11[%c0_24, %c0_25] : memref<8x128xf32, #tpu.memory_space<vmem>>, vector<8x128xf32>
      tpu.vector_store %arg11[%c0_24, %c0_25], %43 {strides = array<i32>} : memref<8x128xf32, #tpu.memory_space<vmem>>, vector<8x128xf32>,
      %cst_26 = arith.constant 0.000000e+00 : f32
      %45 = vector.broadcast %cst_26 : f32 to vector<8x128xf32>
      %c0_27 = arith.constant 0 : index
      %c0_28 = arith.constant 0 : index
      %46 = vector.load %arg12[%c0_27, %c0_28] : memref<8x128xf32, #tpu.memory_space<vmem>>, vector<8x128xf32>
      tpu.vector_store %arg12[%c0_27, %c0_28], %45 {strides = array<i32>} : memref<8x128xf32, #tpu.memory_space<vmem>>, vector<8x128xf32>,
    } else {
    }
    %c0 = arith.constant 0 : index
    %c0_1 = arith.constant 0 : index
    %c0_2 = arith.constant 0 : index
    %3 = vector.load %arg1[%c0, %c0_1, %c0_2] : memref<2x64x64xf32, #tpu.memory_space<vmem>>, vector<2x64x64xf32>
    %4 = vector.shape_cast %3 : vector<2x64x64xf32> to vector<128x64xf32>
    %c0_3 = arith.constant 0 : index
    %c0_4 = arith.constant 0 : index
    %5 = vector.load %arg2[%c0_3, %c0_4] : memref<64x32xf32, #tpu.memory_space<vmem>>, vector<64x32xf32>
    %cst = arith.constant dense<0.000000e+00> : vector<128x32xf32>
    %6 = tpu.matmul %4, %5, %cst {dimension_numbers = #tpu.dot_dimension_numbers<[1], [0], [0], [1], [0, 0, 1, 1], [], []>} : vector<128x64xf32>, vector<64x32xf32>, vector<128x32xf32> -> vector<128x32xf32>
    %c0_5 = arith.constant 0 : index
    %c0_6 = arith.constant 0 : index
    %7 = vector.load %arg3[%c0_5, %c0_6] : memref<1x32xf32, #tpu.memory_space<vmem>>, vector<1x32xf32>
    %8 = vector.broadcast %7 : vector<1x32xf32> to vector<128x32xf32>
    %9 = arith.addf %6, %8 : vector<128x32xf32>
    %10 = arith.negf %9 : vector<128x32xf32>
    %11 = math.exp %10 : vector<128x32xf32>
    %cst_7 = arith.constant 1.000000e+00 : f32
    %12 = vector.broadcast %cst_7 : f32 to vector<128x32xf32>
    %13 = arith.addf %12, %11 : vector<128x32xf32>
    %14 = arith.divf %12, %13 : vector<128x32xf32>
    %15 = arith.mulf %14, %14 : vector<128x32xf32>
    %cst_8 = arith.constant dense<0.000000e+00> : vector<128xf32>
    %16 = vector.multi_reduction <add>, %15, %cst_8 [1] : vector<128x32xf32> to vector<128xf32>
    %17 = vector.shape_cast %16 : vector<128xf32> to vector<128x1xf32>
    %c0_9 = arith.constant 0 : index
    %c0_10 = arith.constant 0 : index
    %18 = vector.load %arg4[%c0_9, %c0_10] : memref<32x128xf32, #tpu.memory_space<vmem>>, vector<32x128xf32>
    %cst_11 = arith.constant dense<0.000000e+00> : vector<128x128xf32>
    %19 = tpu.matmul %14, %18, %cst_11 {dimension_numbers = #tpu.dot_dimension_numbers<[1], [0], [0], [1], [0, 0, 1, 1], [], []>} : vector<128x32xf32>, vector<32x128xf32>, vector<128x128xf32> -> vector<128x128xf32>
    %cst_12 = arith.constant 2.000000e+00 : f32
    %20 = vector.broadcast %cst_12 : f32 to vector<128x128xf32>
    %21 = arith.mulf %20, %19 : vector<128x128xf32>
    %22 = vector.broadcast %17 : vector<128x1xf32> to vector<128x128xf32>
    %23 = arith.subf %22, %21 : vector<128x128xf32>
    %c0_13 = arith.constant 0 : index
    %c0_14 = arith.constant 0 : index
    %24 = vector.load %arg5[%c0_13, %c0_14] : memref<1x128xf32, #tpu.memory_space<vmem>>, vector<1x128xf32>
    %25 = vector.broadcast %24 : vector<1x128xf32> to vector<128x128xf32>
    %26 = arith.addf %23, %25 : vector<128x128xf32>
    %cst_15 = arith.constant 0.000000e+00 : f32
    %27 = vector.broadcast %cst_15 : f32 to vector<128x128xf32>
    %28 = arith.maximumf %26, %27 : vector<128x128xf32>
    %29 = vector.shape_cast %28 : vector<128x128xf32> to vector<2x64x128xf32>
    %c2_i32 = arith.constant 2 : i32
    %30 = arith.muli %arg0, %c2_i32 : i32
    %31 = tpu.assume_multiple %30, 2 : i32
    %cst_16 = arith.constant dense<0x7F800000> : vector<2x128xf32>
    %32 = vector.multi_reduction <minimumf>, %29, %cst_16 [1] : vector<2x64x128xf32> to vector<2x128xf32>
    %33 = arith.index_cast %31 : i32 to index
    %c0_17 = arith.constant 0 : index
    %34 = vector.load %arg11[%33, %c0_17] : memref<8x128xf32, #tpu.memory_space<vmem>>, vector<2x128xf32>
    tpu.vector_store %arg11[%33, %c0_17], %32 {strides = array<i32>} : memref<8x128xf32, #tpu.memory_space<vmem>>, vector<2x128xf32>,
    %cst_18 = arith.constant dense<0.000000e+00> : vector<2x128xf32>
    %35 = vector.multi_reduction <add>, %29, %cst_18 [1] : vector<2x64x128xf32> to vector<2x128xf32>
    %cst_19 = arith.constant 6.400000e+01 : f32
    %36 = vector.broadcast %cst_19 : f32 to vector<2x128xf32>
    %37 = arith.divf %35, %36 : vector<2x128xf32>
    %38 = arith.index_cast %31 : i32 to index
    %c0_20 = arith.constant 0 : index
    %39 = vector.load %arg12[%38, %c0_20] : memref<8x128xf32, #tpu.memory_space<vmem>>, vector<2x128xf32>
    tpu.vector_store %arg12[%38, %c0_20], %37 {strides = array<i32>} : memref<8x128xf32, #tpu.memory_space<vmem>>, vector<2x128xf32>,
    %c0_i32_21 = arith.constant 0 : i32
    %40 = arith.cmpi eq, %arg0, %c0_i32_21 : i32
    %41 = arith.extui %40 : i1 to i32
    %c0_i32_22 = arith.constant 0 : i32
    %42 = arith.cmpi ne, %41, %c0_i32_22 : i32
    scf.if %42 {
      %c0_23 = arith.constant 0 : index
      %c0_24 = arith.constant 0 : index
      %43 = vector.load %arg11[%c0_23, %c0_24] : memref<8x128xf32, #tpu.memory_space<vmem>>, vector<8x128xf32>
      %c0_25 = arith.constant 0 : index
      %c0_26 = arith.constant 0 : index
      %44 = vector.load %arg12[%c0_25, %c0_26] : memref<8x128xf32, #tpu.memory_space<vmem>>, vector<8x128xf32>
      %c0_27 = arith.constant 0 : index
      %c0_28 = arith.constant 0 : index
      %45 = vector.load %arg6[%c0_27, %c0_28] : memref<128x128xf32, #tpu.memory_space<vmem>>, vector<128x128xf32>
      %cst_29 = arith.constant dense<0.000000e+00> : vector<8x128xf32>
      %46 = tpu.matmul %43, %45, %cst_29 {dimension_numbers = #tpu.dot_dimension_numbers<[1], [0], [0], [1], [0, 0, 1, 1], [], []>} : vector<8x128xf32>, vector<128x128xf32>, vector<8x128xf32> -> vector<8x128xf32>
      %c0_30 = arith.constant 0 : index
      %c0_31 = arith.constant 0 : index
      %47 = vector.load %arg6[%c0_30, %c0_31] : memref<128x128xf32, #tpu.memory_space<vmem>>, vector<128x128xf32>
      %cst_32 = arith.constant dense<0.000000e+00> : vector<8x128xf32>
      %48 = tpu.matmul %44, %47, %cst_32 {dimension_numbers = #tpu.dot_dimension_numbers<[1], [0], [0], [1], [0, 0, 1, 1], [], []>} : vector<8x128xf32>, vector<128x128xf32>, vector<8x128xf32> -> vector<8x128xf32>
      %cst_33 = arith.constant 1.000000e+00 : f32
      %49 = vector.broadcast %cst_33 : f32 to vector<8x128xf32>
      %50 = arith.addf %46, %49 : vector<8x128xf32>
      %cst_34 = arith.constant 9.99999974E-5 : f32
      %51 = vector.broadcast %cst_34 : f32 to vector<8x128xf32>
      %52 = arith.addf %46, %51 : vector<8x128xf32>
      %53 = arith.divf %50, %52 : vector<8x128xf32>
      %54 = math.log %53 : vector<8x128xf32>
      %cst_35 = arith.constant 1.000000e+00 : f32
      %55 = vector.broadcast %cst_35 : f32 to vector<8x128xf32>
      %56 = arith.addf %48, %55 : vector<8x128xf32>
      %cst_36 = arith.constant 9.99999974E-5 : f32
      %57 = vector.broadcast %cst_36 : f32 to vector<8x128xf32>
      %58 = arith.addf %48, %57 : vector<8x128xf32>
      %59 = arith.divf %56, %58 : vector<8x128xf32>
      %60 = math.log %59 : vector<8x128xf32>
      %61 = arith.subf %54, %60 : vector<8x128xf32>
      %c0_37 = arith.constant 0 : index
      %c0_38 = arith.constant 0 : index
      %62 = vector.load %arg7[%c0_37, %c0_38] : memref<128x128xf32, #tpu.memory_space<vmem>>, vector<128x128xf32>
      %cst_39 = arith.constant dense<0.000000e+00> : vector<8x128xf32>
      %63 = tpu.matmul %61, %62, %cst_39 {dimension_numbers = #tpu.dot_dimension_numbers<[1], [0], [0], [1], [0, 0, 1, 1], [], []>} : vector<8x128xf32>, vector<128x128xf32>, vector<8x128xf32> -> vector<8x128xf32>
      %c0_40 = arith.constant 0 : index
      %c0_41 = arith.constant 0 : index
      %64 = vector.load %arg8[%c0_40, %c0_41] : memref<8x128xf32, #tpu.memory_space<vmem>>, vector<8x128xf32>
      tpu.vector_store %arg8[%c0_40, %c0_41], %63 {strides = array<i32>} : memref<8x128xf32, #tpu.memory_space<vmem>>, vector<8x128xf32>,
      %c0_42 = arith.constant 0 : index
      %c0_43 = arith.constant 0 : index
      %65 = vector.load %arg9[%c0_42, %c0_43] : memref<8x128xf32, #tpu.memory_space<vmem>>, vector<8x128xf32>
      tpu.vector_store %arg9[%c0_42, %c0_43], %43 {strides = array<i32>} : memref<8x128xf32, #tpu.memory_space<vmem>>, vector<8x128xf32>,
      %cst_44 = arith.constant 1.000000e+00 : f32
      %66 = vector.broadcast %cst_44 : f32 to vector<8x128xf32>
      %67 = arith.addf %43, %66 : vector<8x128xf32>
      %cst_45 = arith.constant 9.99999974E-5 : f32
      %68 = vector.broadcast %cst_45 : f32 to vector<8x128xf32>
      %69 = arith.addf %43, %68 : vector<8x128xf32>
      %70 = arith.divf %67, %69 : vector<8x128xf32>
      %71 = math.log %70 : vector<8x128xf32>
      %cst_46 = arith.constant 1.000000e+00 : f32
      %72 = vector.broadcast %cst_46 : f32 to vector<8x128xf32>
      %73 = arith.addf %44, %72 : vector<8x128xf32>
      %cst_47 = arith.constant 9.99999974E-5 : f32
      %74 = vector.broadcast %cst_47 : f32 to vector<8x128xf32>
      %75 = arith.addf %44, %74 : vector<8x128xf32>
      %76 = arith.divf %73, %75 : vector<8x128xf32>
      %77 = math.log %76 : vector<8x128xf32>
      %78 = arith.subf %71, %77 : vector<8x128xf32>
      %cst_48 = arith.constant 0.000000e+00 : f32
      %79 = vector.broadcast %cst_48 : f32 to vector<8x128xf32>
      %80 = arith.maximumf %78, %79 : vector<8x128xf32>
      %81 = math.sqrt %80 : vector<8x128xf32>
      %cst_49 = arith.constant 1.000000e+00 : f32
      %82 = vector.broadcast %cst_49 : f32 to vector<8x128xf32>
      %83 = arith.subf %81, %82 : vector<8x128xf32>
      %c0_50 = arith.constant 0 : index
      %c0_51 = arith.constant 0 : index
      %84 = vector.load %arg10[%c0_50, %c0_51] : memref<8x128xf32, #tpu.memory_space<vmem>>, vector<8x128xf32>
      tpu.vector_store %arg10[%c0_50, %c0_51], %83 {strides = array<i32>} : memref<8x128xf32, #tpu.memory_space<vmem>>, vector<8x128xf32>,
    } else {
    }
    return
  }
  func.func @transform_0(%arg0: i32) -> (i32, i32, i32) {
    %c0_i32 = arith.constant 0 : i32
    %c0_i32_0 = arith.constant 0 : i32
    %c0_i32_1 = arith.constant 0 : i32
    return %arg0, %c0_i32, %c0_i32_0 : i32, i32, i32
  }
  func.func @transform_1(%arg0: i32) -> (i32, i32) {
    %c0_i32 = arith.constant 0 : i32
    %c0_i32_0 = arith.constant 0 : i32
    %c0_i32_1 = arith.constant 0 : i32
    return %c0_i32, %c0_i32_0 : i32, i32
  }
  func.func @transform_2(%arg0: i32) -> (i32, i32) {
    %c0_i32 = arith.constant 0 : i32
    %c0_i32_0 = arith.constant 0 : i32
    %c0_i32_1 = arith.constant 0 : i32
    return %c0_i32, %c0_i32_0 : i32, i32
  }
  func.func @transform_3(%arg0: i32) -> (i32, i32) {
    %c0_i32 = arith.constant 0 : i32
    %c0_i32_0 = arith.constant 0 : i32
    %c0_i32_1 = arith.constant 0 : i32
    return %c0_i32, %c0_i32_0 : i32, i32
  }
  func.func @transform_4(%arg0: i32) -> (i32, i32) {
    %c0_i32 = arith.constant 0 : i32
    %c0_i32_0 = arith.constant 0 : i32
    %c0_i32_1 = arith.constant 0 : i32
    return %c0_i32, %c0_i32_0 : i32, i32
  }
  func.func @transform_5(%arg0: i32) -> (i32, i32) {
    %c0_i32 = arith.constant 0 : i32
    %c0_i32_0 = arith.constant 0 : i32
    %c0_i32_1 = arith.constant 0 : i32
    return %c0_i32, %c0_i32_0 : i32, i32
  }
  func.func @transform_6(%arg0: i32) -> (i32, i32) {
    %c0_i32 = arith.constant 0 : i32
    %c0_i32_0 = arith.constant 0 : i32
    %c0_i32_1 = arith.constant 0 : i32
    return %c0_i32, %c0_i32_0 : i32, i32
  }
  func.func @transform_7(%arg0: i32) -> (i32, i32) {
    %c0_i32 = arith.constant 0 : i32
    %c0_i32_0 = arith.constant 0 : i32
    %c0_i32_1 = arith.constant 0 : i32
    return %c0_i32, %c0_i32_0 : i32, i32
  }
  func.func @transform_8(%arg0: i32) -> (i32, i32) {
    %c0_i32 = arith.constant 0 : i32
    %c0_i32_0 = arith.constant 0 : i32
    %c0_i32_1 = arith.constant 0 : i32
    return %c0_i32, %c0_i32_0 : i32, i32
  }
  func.func @transform_9(%arg0: i32) -> (i32, i32) {
    %c0_i32 = arith.constant 0 : i32
    %c0_i32_0 = arith.constant 0 : i32
    %c0_i32_1 = arith.constant 0 : i32
    return %c0_i32, %c0_i32_0 : i32, i32
  }
}

</mosaic_0001>

<llo_original>
// kernel: prototype_chooser_forward.1
$region0: #{prototype_chooser_forward.1}
  #allocation0 [shape = 'u32[]', space=smem, size = 0x4, offset = 0x4, fixed_abs, tag = 'smem constant byte address 0x4 - core index']
  #allocation1 [shape = 'u32[144,128]{1,0:T(1,128)}', space=vmem, size = 0x12000, scoped, tag = 'internal scratch']
  #allocation2 [shape = 'f32[8,128]{1,0:T(8,128)}', space=vmem, size = 0x1000, scoped, tag = 'scratch operand']
  #allocation3 [shape = 'f32[8,128]{1,0:T(8,128)}', space=vmem, size = 0x1000, scoped, tag = 'scratch operand']
  %s0 = inlined_call_operand.vmem [shape: f32[2,64,64], index: 0, kind: input, shape index: {}]
  %s1 = inlined_call_operand.vmem [shape: f32[64,32], index: 1, kind: input, shape index: {}]
  %s2 = inlined_call_operand.vmem [shape: f32[1,32], index: 2, kind: input, shape index: {}]
  %s3 = inlined_call_operand.vmem [shape: f32[32,128], index: 3, kind: input, shape index: {}]
  %s4 = inlined_call_operand.vmem [shape: f32[1,128], index: 4, kind: input, shape index: {}]
  %s5 = inlined_call_operand.vmem [shape: f32[128,128], index: 5, kind: input, shape index: {}]
  %s6 = inlined_call_operand.vmem [shape: f32[128,128], index: 6, kind: input, shape index: {}]
  %s7 = inlined_call_operand.vmem [shape: f32[8,128], index: 7, kind: output, shape index: {0}]
  %s8 = inlined_call_operand.vmem [shape: f32[8,128], index: 8, kind: output, shape index: {1}]
  %s9 = inlined_call_operand.vmem [shape: f32[8,128], index: 9, kind: output, shape index: {2}]
  %10 = xla_tuple %s7, %s8, %s9
  %s11 = sld [smem:[#allocation0]]
  $region62: #{prototype_chooser_forward.1} parent=0
    _
  %s13 = ssub.s32 1, %s11
  %s14 = scalar_select 0, %s13, %s11
  // Predicated region
  $region2: #{prototype_chooser_forward.1} parent=0 // pred_check
    _
  $region3: #{prototype_chooser_forward.1} parent=0 // pred_check_branch
    %16 = sbr.rel (0) target = $region5
  $region4: #{prototype_chooser_forward.1} parent=0 // pred_region
    _
  $region5: #{prototype_chooser_forward.1} parent=0 // pred_fallthru
    _
  // Predicated region
  $region6: #{prototype_chooser_forward.1} parent=0 // pred_check
    _
  $region7: #{prototype_chooser_forward.1} parent=0 // pred_check_branch
    %18 = sbr.rel (0) target = $region9
  $region8: #{prototype_chooser_forward.1} parent=0 // pred_region
    _
  $region9: #{prototype_chooser_forward.1} parent=0 // pred_fallthru
    _
  // Predicated region
  $region10: #{prototype_chooser_forward.1} parent=0 // pred_check
    _
  $region11: #{prototype_chooser_forward.1} parent=0 // pred_check_branch
    %20 = sbr.rel (0) target = $region13
  $region12: #{prototype_chooser_forward.1} parent=0 // pred_region
    _
  $region13: #{prototype_chooser_forward.1} parent=0 // pred_fallthru
    _
  // Predicated region
  $region14: #{prototype_chooser_forward.1} parent=0 // pred_check
    _
  $region15: #{prototype_chooser_forward.1} parent=0 // pred_check_branch
    %22 = sbr.rel (0) target = $region17
  $region16: #{prototype_chooser_forward.1} parent=0 // pred_region
    _
  $region17: #{prototype_chooser_forward.1} parent=0 // pred_fallthru
    _
  // Predicated region
  $region18: #{prototype_chooser_forward.1} parent=0 // pred_check
    _
  $region19: #{prototype_chooser_forward.1} parent=0 // pred_check_branch
    %24 = sbr.rel (0) target = $region21
  $region20: #{prototype_chooser_forward.1} parent=0 // pred_region
    _
  $region21: #{prototype_chooser_forward.1} parent=0 // pred_fallthru
    _
  // Predicated region
  $region22: #{prototype_chooser_forward.1} parent=0 // pred_check
    _
  $region23: #{prototype_chooser_forward.1} parent=0 // pred_check_branch
    %26 = sbr.rel (0) target = $region25
  $region24: #{prototype_chooser_forward.1} parent=0 // pred_region
    _
  $region25: #{prototype_chooser_forward.1} parent=0 // pred_fallthru
    _
  // Predicated region
  $region26: #{prototype_chooser_forward.1} parent=0 // pred_check
    _
  $region27: #{prototype_chooser_forward.1} parent=0 // pred_check_branch
    %28 = sbr.rel (0) target = $region29
  $region28: #{prototype_chooser_forward.1} parent=0 // pred_region
    _
  $region29: #{prototype_chooser_forward.1} parent=0 // pred_fallthru
    _
  %p29 = scmp.eq.s32.totalorder 0, 0
  // Predicated region
  $region30: #{prototype_chooser_forward.1} parent=0 // pred_check
    %p30 = pneg %p29
  $region31: #{prototype_chooser_forward.1} parent=0 // pred_check_branch
    %32 = sbr.rel (%p30) target = $region33
  $region32: #{prototype_chooser_forward.1} parent=0 // pred_region
    %33 = vst [vmem:[#allocation2] sm:$0xff] 0.0
    %34 = vst [vmem:[#allocation3] sm:$0xff] 0.0
  $region33: #{prototype_chooser_forward.1} parent=0 // pred_fallthru
    _
  %v35 = vld [vmem:[%s0] sm:$0xff]
  %v36 = vld [vmem:[%s0 + $0x8] sm:$0xff]
  %v37 = vld [vmem:[%s0 + $0x10] sm:$0xff]
  %v38 = vld [vmem:[%s0 + $0x18] sm:$0xff]
  %v39 = vld [vmem:[%s0 + $0x20] sm:$0xff]
  %v40 = vld [vmem:[%s0 + $0x28] sm:$0xff]
  %v41 = vld [vmem:[%s0 + $0x30] sm:$0xff]
  %v42 = vld [vmem:[%s0 + $0x38] sm:$0xff]
  %v43 = vld [vmem:[%s0 + $0x40] sm:$0xff]
  %v44 = vld [vmem:[%s0 + $0x48] sm:$0xff]
  %v45 = vld [vmem:[%s0 + $0x50] sm:$0xff]
  %v46 = vld [vmem:[%s0 + $0x58] sm:$0xff]
  %v47 = vld [vmem:[%s0 + $0x60] sm:$0xff]
  %v48 = vld [vmem:[%s0 + $0x68] sm:$0xff]
  %v49 = vld [vmem:[%s0 + $0x70] sm:$0xff]
  %v50 = vld [vmem:[%s0 + $0x78] sm:$0xff]
  %v51 = vld [vmem:[%s1] sm:$0xff]
  %v52 = vld [vmem:[%s1 + $0x8] sm:$0xff]
  %v53 = vld [vmem:[%s1 + $0x10] sm:$0xff]
  %v54 = vld [vmem:[%s1 + $0x18] sm:$0xff]
  %v55 = vld [vmem:[%s1 + $0x20] sm:$0xff]
  %v56 = vld [vmem:[%s1 + $0x28] sm:$0xff]
  %v57 = vld [vmem:[%s1 + $0x30] sm:$0xff]
  %v58 = vld [vmem:[%s1 + $0x38] sm:$0xff]
  %v59 = vld [vmem:[%s2] sm:$0x1]
  %v61 = vlaneseq
  %v62 = vshrl.u32 %v61, 7
  %v63 = vsub.s32 0, %v62
  %v64 = vrot.slane %v59, %v63
  %vm66 = vcmask 523264
  %v68 = vsel %vm66, %v35, 0
  %v71 = vsel %vm66, %v36, 0
  %v74 = vsel %vm66, %v37, 0
  %v77 = vsel %vm66, %v38, 0
  %v80 = vsel %vm66, %v39, 0
  %v83 = vsel %vm66, %v40, 0
  %v86 = vsel %vm66, %v41, 0
  %v89 = vsel %vm66, %v42, 0
  %v92 = vsel %vm66, %v43, 0
  %v95 = vsel %vm66, %v44, 0
  %v98 = vsel %vm66, %v45, 0
  %v101 = vsel %vm66, %v46, 0
  %v104 = vsel %vm66, %v47, 0
  %v107 = vsel %vm66, %v48, 0
  %v110 = vsel %vm66, %v49, 0
  %v113 = vsel %vm66, %v50, 0
  %115 = vmatprep.subr.mxu0 0.0
  %116 = vmatpush1.msra.mxu0 %v51
  %117 = vmatprep.subr.mxu0 0.0
  %118 = vmatpush1.msra.mxu0 %v52
  %119 = vmatprep.subr.mxu0 0.0
  %120 = vmatpush1.msra.mxu0 %v53
  %121 = vmatprep.subr.mxu0 0.0
  %122 = vmatpush1.msra.mxu0 %v54
  %123 = vmatprep.subr.mxu0 0.0
  %124 = vmatpush1.msra.mxu0 %v55
  %125 = vmatprep.subr.mxu0 0.0
  %126 = vmatpush1.msra.mxu0 %v56
  %127 = vmatprep.subr.mxu0 0.0
  %128 = vmatpush1.msra.mxu0 %v57
  %129 = vmatprep.subr.mxu0 0.0
  %130 = vmatpush1.msra.mxu0 %v58
  %131 = vmatprep.subr.mxu0 0.0
  %132 = vmatpush1.msra.mxu0 0.0
  %133 = vmatprep.subr.mxu0 0.0
  %134 = vmatpush1.msra.mxu0 0.0
  %135 = vmatprep.subr.mxu0 0.0
  %136 = vmatpush1.msra.mxu0 0.0
  %137 = vmatprep.subr.mxu0 0.0
  %138 = vmatpush1.msra.mxu0 0.0
  %139 = vmatprep.subr.mxu0 0.0
  %140 = vmatpush1.msra.mxu0 0.0
  %141 = vmatprep.subr.mxu0 0.0
  %142 = vmatpush1.msra.mxu0 0.0
  %143 = vmatprep.subr.mxu0 0.0
  %144 = vmatpush1.msra.mxu0 0.0
  %145 = vmatprep.subr.mxu0 0.0
  %146 = vmatpush1.msra.mxu0 0.0
  %147 = vmatprep.subr.mxu0 0.0
  %148 = vmatpush1.msra.mxu0 0.0
  %149 = vmatprep.subr.mxu0 0.0
  %150 = vmatpush1.msra.mxu0 0.0
  %151 = vmatprep.subr.mxu0 0.0
  %152 = vmatpush1.msra.mxu0 0.0
  %153 = vmatprep.subr.mxu0 0.0
  %154 = vmatpush1.msra.mxu0 0.0
  %155 = vmatprep.subr.mxu0 0.0
  %156 = vmatpush1.msra.mxu0 0.0
  %157 = vmatprep.subr.mxu0 0.0
  %158 = vmatpush1.msra.mxu0 0.0
  %159 = vmatprep.subr.mxu0 0.0
  %160 = vmatpush1.msra.mxu0 0.0
  %161 = vmatprep.subr.mxu0 0.0
  %162 = vmatpush1.msra.mxu0 0.0
  %163 = vmatprep.subr.mxu0 0.0
  %164 = vmatpush1.msra.mxu0 0.0
  %165 = vmatprep.subr.mxu0 0.0
  %166 = vmatpush1.msra.mxu0 0.0
  %167 = vmatprep.subr.mxu0 0.0
  %168 = vmatpush1.msra.mxu0 0.0
  %169 = vmatprep.subr.mxu0 0.0
  %170 = vmatpush1.msra.mxu0 0.0
  %171 = vmatprep.subr.mxu0 0.0
  %172 = vmatpush1.msra.mxu0 0.0
  %173 = vmatprep.subr.mxu0 0.0
  %174 = vmatpush1.msra.mxu0 0.0
  %175 = vmatprep.subr.mxu0 0.0
  %176 = vmatpush1.msra.mxu0 0.0
  %177 = vmatprep.subr.mxu0 0.0
  %178 = vmatpush1.msra.mxu0 0.0
  %179 = vmatprep.mubr.f32.mxu0 0.0
  %180 = vmatmul.mubr.f32.gmra.mrb[0].mxu0 %v68
  %v181 = vpop.f32.mrb[0].mxu0
  %v182 = vadd.f32 %v64, %v181
  %v183 = vpop.f32.mrb[0].mxu0
  %184 = vmatprep.mubr.f32.mxu0 0.0
  %185 = vmatmul.mubr.f32.gmra.mrb[0].mxu0 %v71
  %v186 = vpop.f32.mrb[0].mxu0
  %v187 = vadd.f32 %v64, %v186
  %v188 = vpop.f32.mrb[0].mxu0
  %189 = vmatprep.mubr.f32.mxu0 0.0
  %190 = vmatmul.mubr.f32.gmra.mrb[0].mxu0 %v74
  %v191 = vpop.f32.mrb[0].mxu0
  %v192 = vadd.f32 %v64, %v191
  %v193 = vpop.f32.mrb[0].mxu0
  %194 = vmatprep.mubr.f32.mxu0 0.0
  %195 = vmatmul.mubr.f32.gmra.mrb[0].mxu0 %v77
  %v196 = vpop.f32.mrb[0].mxu0
  %v197 = vadd.f32 %v64, %v196
  %v198 = vpop.f32.mrb[0].mxu0
  %199 = vmatprep.mubr.f32.mxu0 0.0
  %200 = vmatmul.mubr.f32.gmra.mrb[0].mxu0 %v80
  %v201 = vpop.f32.mrb[0].mxu0
  %v202 = vadd.f32 %v64, %v201
  %v203 = vpop.f32.mrb[0].mxu0
  %204 = vmatprep.mubr.f32.mxu0 0.0
  %205 = vmatmul.mubr.f32.gmra.mrb[0].mxu0 %v83
  %v206 = vpop.f32.mrb[0].mxu0
  %v207 = vadd.f32 %v64, %v206
  %v208 = vpop.f32.mrb[0].mxu0
  %209 = vmatprep.mubr.f32.mxu0 0.0
  %210 = vmatmul.mubr.f32.gmra.mrb[0].mxu0 %v86
  %v211 = vpop.f32.mrb[0].mxu0
  %v212 = vadd.f32 %v64, %v211
  %v213 = vpop.f32.mrb[0].mxu0
  %214 = vmatprep.mubr.f32.mxu0 0.0
  %215 = vmatmul.mubr.f32.gmra.mrb[0].mxu0 %v89
  %v216 = vpop.f32.mrb[0].mxu0
  %v217 = vadd.f32 %v64, %v216
  %v218 = vpop.f32.mrb[0].mxu0
  %219 = vmatprep.mubr.f32.mxu0 0.0
  %220 = vmatmul.mubr.f32.gmra.mrb[0].mxu0 %v92
  %v221 = vpop.f32.mrb[0].mxu0
  %v222 = vadd.f32 %v64, %v221
  %v223 = vpop.f32.mrb[0].mxu0
  %224 = vmatprep.mubr.f32.mxu0 0.0
  %225 = vmatmul.mubr.f32.gmra.mrb[0].mxu0 %v95
  %v226 = vpop.f32.mrb[0].mxu0
  %v227 = vadd.f32 %v64, %v226
  %v228 = vpop.f32.mrb[0].mxu0
  %229 = vmatprep.mubr.f32.mxu0 0.0
  %230 = vmatmul.mubr.f32.gmra.mrb[0].mxu0 %v98
  %v231 = vpop.f32.mrb[0].mxu0
  %v232 = vadd.f32 %v64, %v231
  %v233 = vpop.f32.mrb[0].mxu0
  %234 = vmatprep.mubr.f32.mxu0 0.0
  %235 = vmatmul.mubr.f32.gmra.mrb[0].mxu0 %v101
  %v236 = vpop.f32.mrb[0].mxu0
  %v237 = vadd.f32 %v64, %v236
  %v238 = vpop.f32.mrb[0].mxu0
  %239 = vmatprep.mubr.f32.mxu0 0.0
  %240 = vmatmul.mubr.f32.gmra.mrb[0].mxu0 %v104
  %v241 = vpop.f32.mrb[0].mxu0
  %v242 = vadd.f32 %v64, %v241
  %v243 = vpop.f32.mrb[0].mxu0
  %244 = vmatprep.mubr.f32.mxu0 0.0
  %245 = vmatmul.mubr.f32.gmra.mrb[0].mxu0 %v107
  %v246 = vpop.f32.mrb[0].mxu0
  %v247 = vadd.f32 %v64, %v246
  %v248 = vpop.f32.mrb[0].mxu0
  %249 = vmatprep.mubr.f32.mxu0 0.0
  %250 = vmatmul.mubr.f32.gmra.mrb[0].mxu0 %v110
  %v251 = vpop.f32.mrb[0].mxu0
  %v252 = vadd.f32 %v64, %v251
  %v253 = vpop.f32.mrb[0].mxu0
  %254 = vmatprep.mubr.f32.mxu0 0.0
  %255 = vmatmul.mubr.f32.gmra.mrb[0].mxu0 %v113
  %v256 = vpop.f32.mrb[0].mxu0
  %v257 = vadd.f32 %v64, %v256
  %v258 = vpop.f32.mrb[0].mxu0
  %259 = vdwg.mxu0
  %v260 = vxor.u32 %v182, 2147483648
  %v261 = vxor.u32 %v187, 2147483648
  %v262 = vxor.u32 %v192, 2147483648
  %v263 = vxor.u32 %v197, 2147483648
  %v264 = vxor.u32 %v202, 2147483648
  %v265 = vxor.u32 %v207, 2147483648
  %v266 = vxor.u32 %v212, 2147483648
  %v267 = vxor.u32 %v217, 2147483648
  %v268 = vxor.u32 %v222, 2147483648
  %v269 = vxor.u32 %v227, 2147483648
  %v270 = vxor.u32 %v232, 2147483648
  %v271 = vxor.u32 %v237, 2147483648
  %v272 = vxor.u32 %v242, 2147483648
  %v273 = vxor.u32 %v247, 2147483648
  %v274 = vxor.u32 %v252, 2147483648
  %v275 = vxor.u32 %v257, 2147483648
  %v276 = vmul.f32 %v260, 1.442695
  %v277 = vpow.pop %v276
  %v278 = vmul.f32 %v261, 1.442695
  %v279 = vpow.pop %v278
  %v280 = vmul.f32 %v262, 1.442695
  %v281 = vpow.pop %v280
  %v282 = vmul.f32 %v263, 1.442695
  %v283 = vpow.pop %v282
  %v284 = vmul.f32 %v264, 1.442695
  %v285 = vpow.pop %v284
  %v286 = vmul.f32 %v265, 1.442695
  %v287 = vpow.pop %v286
  %v288 = vmul.f32 %v266, 1.442695
  %v289 = vpow.pop %v288
  %v290 = vmul.f32 %v267, 1.442695
  %v291 = vpow.pop %v290
  %v292 = vmul.f32 %v268, 1.442695
  %v293 = vpow.pop %v292
  %v294 = vmul.f32 %v269, 1.442695
  %v295 = vpow.pop %v294
  %v296 = vmul.f32 %v270, 1.442695
  %v297 = vpow.pop %v296
  %v298 = vmul.f32 %v271, 1.442695
  %v299 = vpow.pop %v298
  %v300 = vmul.f32 %v272, 1.442695
  %v301 = vpow.pop %v300
  %v302 = vmul.f32 %v273, 1.442695
  %v303 = vpow.pop %v302
  %v304 = vmul.f32 %v274, 1.442695
  %v305 = vpow.pop %v304
  %v306 = vmul.f32 %v275, 1.442695
  %v307 = vpow.pop %v306
  %v308 = vadd.f32 %v277, 1.0
  %v309 = vadd.f32 %v279, 1.0
  %v310 = vadd.f32 %v281, 1.0
  %v311 = vadd.f32 %v283, 1.0
  %v312 = vadd.f32 %v285, 1.0
  %v313 = vadd.f32 %v287, 1.0
  %v314 = vadd.f32 %v289, 1.0
  %v315 = vadd.f32 %v291, 1.0
  %v316 = vadd.f32 %v293, 1.0
  %v317 = vadd.f32 %v295, 1.0
  %v318 = vadd.f32 %v297, 1.0
  %v319 = vadd.f32 %v299, 1.0
  %v320 = vadd.f32 %v301, 1.0
  %v321 = vadd.f32 %v303, 1.0
  %v322 = vadd.f32 %v305, 1.0
  %v323 = vadd.f32 %v307, 1.0
  %v324 = vrcp.pop %v308
  %v325 = vmul.f32 1.0, %v324
  %v326 = vrcp.pop %v309
  %v327 = vmul.f32 1.0, %v326
  %v328 = vrcp.pop %v310
  %v329 = vmul.f32 1.0, %v328
  %v330 = vrcp.pop %v311
  %v331 = vmul.f32 1.0, %v330
  %v332 = vrcp.pop %v312
  %v333 = vmul.f32 1.0, %v332
  %v334 = vrcp.pop %v313
  %v335 = vmul.f32 1.0, %v334
  %v336 = vrcp.pop %v314
  %v337 = vmul.f32 1.0, %v336
  %v338 = vrcp.pop %v315
  %v339 = vmul.f32 1.0, %v338
  %v340 = vrcp.pop %v316
  %v341 = vmul.f32 1.0, %v340
  %v342 = vrcp.pop %v317
  %v343 = vmul.f32 1.0, %v342
  %v344 = vrcp.pop %v318
  %v345 = vmul.f32 1.0, %v344
  %v346 = vrcp.pop %v319
  %v347 = vmul.f32 1.0, %v346
  %v348 = vrcp.pop %v320
  %v349 = vmul.f32 1.0, %v348
  %v350 = vrcp.pop %v321
  %v351 = vmul.f32 1.0, %v350
  %v352 = vrcp.pop %v322
  %v353 = vmul.f32 1.0, %v352
  %v354 = vrcp.pop %v323
  %v355 = vmul.f32 1.0, %v354
  %v356 = vmul.f32 %v325, %v325
  %v357 = vmul.f32 %v327, %v327
  %v358 = vmul.f32 %v329, %v329
  %v359 = vmul.f32 %v331, %v331
  %v360 = vmul.f32 %v333, %v333
  %v361 = vmul.f32 %v335, %v335
  %v362 = vmul.f32 %v337, %v337
  %v363 = vmul.f32 %v339, %v339
  %v364 = vmul.f32 %v341, %v341
  %v365 = vmul.f32 %v343, %v343
  %v366 = vmul.f32 %v345, %v345
  %v367 = vmul.f32 %v347, %v347
  %v368 = vmul.f32 %v349, %v349
  %v369 = vmul.f32 %v351, %v351
  %v370 = vmul.f32 %v353, %v353
  %v371 = vmul.f32 %v355, %v355
  %vm372 = vcmask 261120
  %v373 = vsel %vm372, %v356, 0.0
  %374 = vadd.xlane.f32.xlu0 %v373
  %v375 = vpop.xlane.xlu0 %374
  %v376 = vsel %vm372, %v357, 0.0
  %377 = vadd.xlane.f32.xlu0 %v376
  %v378 = vpop.xlane.xlu0 %377
  %v379 = vsel %vm372, %v358, 0.0
  %380 = vadd.xlane.f32.xlu0 %v379
  %v381 = vpop.xlane.xlu0 %380
  %v382 = vsel %vm372, %v359, 0.0
  %383 = vadd.xlane.f32.xlu0 %v382
  %v384 = vpop.xlane.xlu0 %383
  %v385 = vsel %vm372, %v360, 0.0
  %386 = vadd.xlane.f32.xlu0 %v385
  %v387 = vpop.xlane.xlu0 %386
  %v388 = vsel %vm372, %v361, 0.0
  %389 = vadd.xlane.f32.xlu0 %v388
  %v390 = vpop.xlane.xlu0 %389
  %v391 = vsel %vm372, %v362, 0.0
  %392 = vadd.xlane.f32.xlu0 %v391
  %v393 = vpop.xlane.xlu0 %392
  %v394 = vsel %vm372, %v363, 0.0
  %395 = vadd.xlane.f32.xlu0 %v394
  %v396 = vpop.xlane.xlu0 %395
  %v397 = vsel %vm372, %v364, 0.0
  %398 = vadd.xlane.f32.xlu0 %v397
  %v399 = vpop.xlane.xlu0 %398
  %v400 = vsel %vm372, %v365, 0.0
  %401 = vadd.xlane.f32.xlu0 %v400
  %v402 = vpop.xlane.xlu0 %401
  %v403 = vsel %vm372, %v366, 0.0
  %404 = vadd.xlane.f32.xlu0 %v403
  %v405 = vpop.xlane.xlu0 %404
  %v406 = vsel %vm372, %v367, 0.0
  %407 = vadd.xlane.f32.xlu0 %v406
  %v408 = vpop.xlane.xlu0 %407
  %v409 = vsel %vm372, %v368, 0.0
  %410 = vadd.xlane.f32.xlu0 %v409
  %v411 = vpop.xlane.xlu0 %410
  %v412 = vsel %vm372, %v369, 0.0
  %413 = vadd.xlane.f32.xlu0 %v412
  %v414 = vpop.xlane.xlu0 %413
  %v415 = vsel %vm372, %v370, 0.0
  %416 = vadd.xlane.f32.xlu0 %v415
  %v417 = vpop.xlane.xlu0 %416
  %v418 = vsel %vm372, %v371, 0.0
  %419 = vadd.xlane.f32.xlu0 %v418
  %v420 = vpop.xlane.xlu0 %419
  %v421 = vld [vmem:[%s3] sm:$0xff]
  %v422 = vld [vmem:[%s3 + $0x8] sm:$0xff]
  %v423 = vld [vmem:[%s3 + $0x10] sm:$0xff]
  %v424 = vld [vmem:[%s3 + $0x18] sm:$0xff]
  %v426 = vsel %vm372, %v325, 0
  %v429 = vsel %vm372, %v327, 0
  %v432 = vsel %vm372, %v329, 0
  %v435 = vsel %vm372, %v331, 0
  %v438 = vsel %vm372, %v333, 0
  %v441 = vsel %vm372, %v335, 0
  %v444 = vsel %vm372, %v337, 0
  %v447 = vsel %vm372, %v339, 0
  %v450 = vsel %vm372, %v341, 0
  %v453 = vsel %vm372, %v343, 0
  %v456 = vsel %vm372, %v345, 0
  %v459 = vsel %vm372, %v347, 0
  %v462 = vsel %vm372, %v349, 0
  %v465 = vsel %vm372, %v351, 0
  %v468 = vsel %vm372, %v353, 0
  %v471 = vsel %vm372, %v355, 0
  %473 = vmatprep.subr.mxu0 0.0
  %474 = vmatpush1.msra.mxu0 %v421
  %475 = vmatprep.subr.mxu0 0.0
  %476 = vmatpush1.msra.mxu0 %v422
  %477 = vmatprep.subr.mxu0 0.0
  %478 = vmatpush1.msra.mxu0 %v423
  %479 = vmatprep.subr.mxu0 0.0
  %480 = vmatpush1.msra.mxu0 %v424
  %481 = vmatprep.subr.mxu0 0.0
  %482 = vmatpush1.msra.mxu0 0.0
  %483 = vmatprep.subr.mxu0 0.0
  %484 = vmatpush1.msra.mxu0 0.0
  %485 = vmatprep.subr.mxu0 0.0
  %486 = vmatpush1.msra.mxu0 0.0
  %487 = vmatprep.subr.mxu0 0.0
  %488 = vmatpush1.msra.mxu0 0.0
  %489 = vmatprep.subr.mxu0 0.0
  %490 = vmatpush1.msra.mxu0 0.0
  %491 = vmatprep.subr.mxu0 0.0
  %492 = vmatpush1.msra.mxu0 0.0
  %493 = vmatprep.subr.mxu0 0.0
  %494 = vmatpush1.msra.mxu0 0.0
  %495 = vmatprep.subr.mxu0 0.0
  %496 = vmatpush1.msra.mxu0 0.0
  %497 = vmatprep.subr.mxu0 0.0
  %498 = vmatpush1.msra.mxu0 0.0
  %499 = vmatprep.subr.mxu0 0.0
  %500 = vmatpush1.msra.mxu0 0.0
  %501 = vmatprep.subr.mxu0 0.0
  %502 = vmatpush1.msra.mxu0 0.0
  %503 = vmatprep.subr.mxu0 0.0
  %504 = vmatpush1.msra.mxu0 0.0
  %505 = vmatprep.subr.mxu0 0.0
  %506 = vmatpush1.msra.mxu0 0.0
  %507 = vmatprep.subr.mxu0 0.0
  %508 = vmatpush1.msra.mxu0 0.0
  %509 = vmatprep.subr.mxu0 0.0
  %510 = vmatpush1.msra.mxu0 0.0
  %511 = vmatprep.subr.mxu0 0.0
  %512 = vmatpush1.msra.mxu0 0.0
  %513 = vmatprep.subr.mxu0 0.0
  %514 = vmatpush1.msra.mxu0 0.0
  %515 = vmatprep.subr.mxu0 0.0
  %516 = vmatpush1.msra.mxu0 0.0
  %517 = vmatprep.subr.mxu0 0.0
  %518 = vmatpush1.msra.mxu0 0.0
  %519 = vmatprep.subr.mxu0 0.0
  %520 = vmatpush1.msra.mxu0 0.0
  %521 = vmatprep.subr.mxu0 0.0
  %522 = vmatpush1.msra.mxu0 0.0
  %523 = vmatprep.subr.mxu0 0.0
  %524 = vmatpush1.msra.mxu0 0.0
  %525 = vmatprep.subr.mxu0 0.0
  %526 = vmatpush1.msra.mxu0 0.0
  %527 = vmatprep.subr.mxu0 0.0
  %528 = vmatpush1.msra.mxu0 0.0
  %529 = vmatprep.subr.mxu0 0.0
  %530 = vmatpush1.msra.mxu0 0.0
  %531 = vmatprep.subr.mxu0 0.0
  %532 = vmatpush1.msra.mxu0 0.0
  %533 = vmatprep.subr.mxu0 0.0
  %534 = vmatpush1.msra.mxu0 0.0
  %535 = vmatprep.subr.mxu0 0.0
  %536 = vmatpush1.msra.mxu0 0.0
  %537 = vmatprep.mubr.f32.mxu0 0.0
  %538 = vmatmul.mubr.f32.gmra.mrb[0].mxu0 %v426
  %v539 = vpop.f32.mrb[0].mxu0
  %v540 = vadd.f32 0.0, %v539
  %v541 = vpop.f32.mrb[0].mxu0
  %542 = vmatprep.mubr.f32.mxu0 0.0
  %543 = vmatmul.mubr.f32.gmra.mrb[0].mxu0 %v429
  %v544 = vpop.f32.mrb[0].mxu0
  %v545 = vadd.f32 0.0, %v544
  %v546 = vpop.f32.mrb[0].mxu0
  %547 = vmatprep.mubr.f32.mxu0 0.0
  %548 = vmatmul.mubr.f32.gmra.mrb[0].mxu0 %v432
  %v549 = vpop.f32.mrb[0].mxu0
  %v550 = vadd.f32 0.0, %v549
  %v551 = vpop.f32.mrb[0].mxu0
  %552 = vmatprep.mubr.f32.mxu0 0.0
  %553 = vmatmul.mubr.f32.gmra.mrb[0].mxu0 %v435
  %v554 = vpop.f32.mrb[0].mxu0
  %v555 = vadd.f32 0.0, %v554
  %v556 = vpop.f32.mrb[0].mxu0
  %557 = vmatprep.mubr.f32.mxu0 0.0
  %558 = vmatmul.mubr.f32.gmra.mrb[0].mxu0 %v438
  %v559 = vpop.f32.mrb[0].mxu0
  %v560 = vadd.f32 0.0, %v559
  %v561 = vpop.f32.mrb[0].mxu0
  %562 = vmatprep.mubr.f32.mxu0 0.0
  %563 = vmatmul.mubr.f32.gmra.mrb[0].mxu0 %v441
  %v564 = vpop.f32.mrb[0].mxu0
  %v565 = vadd.f32 0.0, %v564
  %v566 = vpop.f32.mrb[0].mxu0
  %567 = vmatprep.mubr.f32.mxu0 0.0
  %568 = vmatmul.mubr.f32.gmra.mrb[0].mxu0 %v444
  %v569 = vpop.f32.mrb[0].mxu0
  %v570 = vadd.f32 0.0, %v569
  %v571 = vpop.f32.mrb[0].mxu0
  %572 = vmatprep.mubr.f32.mxu0 0.0
  %573 = vmatmul.mubr.f32.gmra.mrb[0].mxu0 %v447
  %v574 = vpop.f32.mrb[0].mxu0
  %v575 = vadd.f32 0.0, %v574
  %v576 = vpop.f32.mrb[0].mxu0
  %577 = vmatprep.mubr.f32.mxu0 0.0
  %578 = vmatmul.mubr.f32.gmra.mrb[0].mxu0 %v450
  %v579 = vpop.f32.mrb[0].mxu0
  %v580 = vadd.f32 0.0, %v579
  %v581 = vpop.f32.mrb[0].mxu0
  %582 = vmatprep.mubr.f32.mxu0 0.0
  %583 = vmatmul.mubr.f32.gmra.mrb[0].mxu0 %v453
  %v584 = vpop.f32.mrb[0].mxu0
  %v585 = vadd.f32 0.0, %v584
  %v586 = vpop.f32.mrb[0].mxu0
  %587 = vmatprep.mubr.f32.mxu0 0.0
  %588 = vmatmul.mubr.f32.gmra.mrb[0].mxu0 %v456
  %v589 = vpop.f32.mrb[0].mxu0
  %v590 = vadd.f32 0.0, %v589
  %v591 = vpop.f32.mrb[0].mxu0
  %592 = vmatprep.mubr.f32.mxu0 0.0
  %593 = vmatmul.mubr.f32.gmra.mrb[0].mxu0 %v459
  %v594 = vpop.f32.mrb[0].mxu0
  %v595 = vadd.f32 0.0, %v594
  %v596 = vpop.f32.mrb[0].mxu0
  %597 = vmatprep.mubr.f32.mxu0 0.0
  %598 = vmatmul.mubr.f32.gmra.mrb[0].mxu0 %v462
  %v599 = vpop.f32.mrb[0].mxu0
  %v600 = vadd.f32 0.0, %v599
  %v601 = vpop.f32.mrb[0].mxu0
  %602 = vmatprep.mubr.f32.mxu0 0.0
  %603 = vmatmul.mubr.f32.gmra.mrb[0].mxu0 %v465
  %v604 = vpop.f32.mrb[0].mxu0
  %v605 = vadd.f32 0.0, %v604
  %v606 = vpop.f32.mrb[0].mxu0
  %607 = vmatprep.mubr.f32.mxu0 0.0
  %608 = vmatmul.mubr.f32.gmra.mrb[0].mxu0 %v468
  %v609 = vpop.f32.mrb[0].mxu0
  %v610 = vadd.f32 0.0, %v609
  %v611 = vpop.f32.mrb[0].mxu0
  %612 = vmatprep.mubr.f32.mxu0 0.0
  %613 = vmatmul.mubr.f32.gmra.mrb[0].mxu0 %v471
  %v614 = vpop.f32.mrb[0].mxu0
  %v615 = vadd.f32 0.0, %v614
  %v616 = vpop.f32.mrb[0].mxu0
  %617 = vdwg.mxu0
  %v618 = vmul.f32 %v540, 2.0
  %v619 = vmul.f32 %v545, 2.0
  %v620 = vmul.f32 %v550, 2.0
  %v621 = vmul.f32 %v555, 2.0
  %v622 = vmul.f32 %v560, 2.0
  %v623 = vmul.f32 %v565, 2.0
  %v624 = vmul.f32 %v570, 2.0
  %v625 = vmul.f32 %v575, 2.0
  %v626 = vmul.f32 %v580, 2.0
  %v627 = vmul.f32 %v585, 2.0
  %v628 = vmul.f32 %v590, 2.0
  %v629 = vmul.f32 %v595, 2.0
  %v630 = vmul.f32 %v600, 2.0
  %v631 = vmul.f32 %v605, 2.0
  %v632 = vmul.f32 %v610, 2.0
  %v633 = vmul.f32 %v615, 2.0
  %v634 = vsub.f32 %v375, %v618
  %v635 = vsub.f32 %v378, %v619
  %v636 = vsub.f32 %v381, %v620
  %v637 = vsub.f32 %v384, %v621
  %v638 = vsub.f32 %v387, %v622
  %v639 = vsub.f32 %v390, %v623
  %v640 = vsub.f32 %v393, %v624
  %v641 = vsub.f32 %v396, %v625
  %v642 = vsub.f32 %v399, %v626
  %v643 = vsub.f32 %v402, %v627
  %v644 = vsub.f32 %v405, %v628
  %v645 = vsub.f32 %v408, %v629
  %v646 = vsub.f32 %v411, %v630
  %v647 = vsub.f32 %v414, %v631
  %v648 = vsub.f32 %v417, %v632
  %v649 = vsub.f32 %v420, %v633
  %v650 = vld [vmem:[%s4] sm:$0x1]
  %v652 = vlaneseq
  %v653 = vshrl.u32 %v652, 7
  %v654 = vsub.s32 0, %v653
  %v655 = vrot.slane %v650, %v654
  %v657 = vadd.f32 %v634, %v655
  %v658 = vadd.f32 %v635, %v655
  %v659 = vadd.f32 %v636, %v655
  %v660 = vadd.f32 %v637, %v655
  %v661 = vadd.f32 %v638, %v655
  %v662 = vadd.f32 %v639, %v655
  %v663 = vadd.f32 %v640, %v655
  %v664 = vadd.f32 %v641, %v655
  %v665 = vadd.f32 %v642, %v655
  %v666 = vadd.f32 %v643, %v655
  %v667 = vadd.f32 %v644, %v655
  %v668 = vadd.f32 %v645, %v655
  %v669 = vadd.f32 %v646, %v655
  %v670 = vadd.f32 %v647, %v655
  %v671 = vadd.f32 %v648, %v655
  %v672 = vadd.f32 %v649, %v655
  %v673 = vmax.f32 %v657, 0.0
  %v674 = vmax.f32 %v658, 0.0
  %v675 = vmax.f32 %v659, 0.0
  %v676 = vmax.f32 %v660, 0.0
  %v677 = vmax.f32 %v661, 0.0
  %v678 = vmax.f32 %v662, 0.0
  %v679 = vmax.f32 %v663, 0.0
  %v680 = vmax.f32 %v664, 0.0
  %v681 = vmax.f32 %v665, 0.0
  %v682 = vmax.f32 %v666, 0.0
  %v683 = vmax.f32 %v667, 0.0
  %v684 = vmax.f32 %v668, 0.0
  %v685 = vmax.f32 %v669, 0.0
  %v686 = vmax.f32 %v670, 0.0
  %v687 = vmax.f32 %v671, 0.0
  %v688 = vmax.f32 %v672, 0.0
  %s689 = smul.u32 0, 2
  %v690 = vmin.f32 %v673, %v675
  %v691 = vmin.f32 %v674, %v676
  %v692 = vmin.f32 %v690, %v677
  %v693 = vmin.f32 %v691, %v678
  %v694 = vmin.f32 %v692, %v679
  %v695 = vmin.f32 %v693, %v680
  %v696 = vmin.f32 %v694, %v695
  %v697 = vrot.slane %v696, 4
  %v698 = vmin.f32 %v696, %v697
  %v699 = vrot.slane %v698, 2
  %v700 = vmin.f32 %v698, %v699
  %v701 = vrot.slane %v700, 1
  %v702 = vmin.f32 %v700, %v701
  %v703 = vmin.f32 %v681, %v683
  %v704 = vmin.f32 %v682, %v684
  %v705 = vmin.f32 %v703, %v685
  %v706 = vmin.f32 %v704, %v686
  %v707 = vmin.f32 %v705, %v687
  %v708 = vmin.f32 %v706, %v688
  %v709 = vmin.f32 %v707, %v708
  %v710 = vrot.slane %v709, 4
  %v711 = vmin.f32 %v709, %v710
  %v712 = vrot.slane %v711, 2
  %v713 = vmin.f32 %v711, %v712
  %v714 = vrot.slane %v713, 1
  %v715 = vmin.f32 %v713, %v714
  %vm718 = vcmask 1041409
  %v719 = vsel %vm718, %v715, %v702
  %s721 = scalar_lea.vmem [#allocation2], %s689
  %722 = vst [vmem:[%s721] sm:$0x3] %v719
  %v723 = vadd.f32 %v673, %v674
  %v724 = vadd.f32 %v723, %v675
  %v725 = vadd.f32 %v724, %v676
  %v726 = vadd.f32 %v725, %v677
  %v727 = vadd.f32 %v726, %v678
  %v728 = vadd.f32 %v727, %v679
  %v729 = vadd.f32 %v728, %v680
  %v730 = vrot.slane %v729, 4
  %v731 = vadd.f32 %v729, %v730
  %v732 = vrot.slane %v731, 2
  %v733 = vadd.f32 %v731, %v732
  %v734 = vrot.slane %v733, 1
  %v735 = vadd.f32 %v733, %v734
  %v736 = vadd.f32 %v681, %v682
  %v737 = vadd.f32 %v736, %v683
  %v738 = vadd.f32 %v737, %v684
  %v739 = vadd.f32 %v738, %v685
  %v740 = vadd.f32 %v739, %v686
  %v741 = vadd.f32 %v740, %v687
  %v742 = vadd.f32 %v741, %v688
  %v743 = vrot.slane %v742, 4
  %v744 = vadd.f32 %v742, %v743
  %v745 = vrot.slane %v744, 2
  %v746 = vadd.f32 %v744, %v745
  %v747 = vrot.slane %v746, 1
  %v748 = vadd.f32 %v746, %v747
  %v749 = vrcp.pop 64.0
  %v750 = vmul.f32 %v735, %v749
  %v751 = vmul.f32 %v748, %v749
  %v754 = vsel %vm718, %v751, %v750
  %s756 = scalar_lea.vmem [#allocation3], %s689
  %757 = vst [vmem:[%s756] sm:$0x3] %v754
  // Predicated region
  $region34: #{prototype_chooser_forward.1} parent=0 // pred_check
    %p758 = pneg %p29
  $region35: #{prototype_chooser_forward.1} parent=0 // pred_check_branch
    %760 = sbr.rel (%p758) target = $region37
  $region36: #{prototype_chooser_forward.1} parent=0 // pred_region
    %v761 = vld [vmem:[#allocation2] sm:$0xff]
    %v762 = vld [vmem:[#allocation3] sm:$0xff]
    %v763 = vld [vmem:[%s5] sm:$0xff]
    %v764 = vld [vmem:[%s5 + $0x8] sm:$0xff]
    %v765 = vld [vmem:[%s5 + $0x10] sm:$0xff]
    %v766 = vld [vmem:[%s5 + $0x18] sm:$0xff]
    %v767 = vld [vmem:[%s5 + $0x20] sm:$0xff]
    %v768 = vld [vmem:[%s5 + $0x28] sm:$0xff]
    %v769 = vld [vmem:[%s5 + $0x30] sm:$0xff]
    %v770 = vld [vmem:[%s5 + $0x38] sm:$0xff]
    %v771 = vld [vmem:[%s5 + $0x40] sm:$0xff]
    %v772 = vld [vmem:[%s5 + $0x48] sm:$0xff]
    %v773 = vld [vmem:[%s5 + $0x50] sm:$0xff]
    %v774 = vld [vmem:[%s5 + $0x58] sm:$0xff]
    %v775 = vld [vmem:[%s5 + $0x60] sm:$0xff]
    %v776 = vld [vmem:[%s5 + $0x68] sm:$0xff]
    %v777 = vld [vmem:[%s5 + $0x70] sm:$0xff]
    %v778 = vld [vmem:[%s5 + $0x78] sm:$0xff]
    %779 = vmatprep.subr.mxu0 0.0
    %780 = vmatpush1.msra.mxu0 %v763
    %781 = vmatprep.subr.mxu0 0.0
    %782 = vmatpush1.msra.mxu0 %v764
    %783 = vmatprep.subr.mxu0 0.0
    %784 = vmatpush1.msra.mxu0 %v765
    %785 = vmatprep.subr.mxu0 0.0
    %786 = vmatpush1.msra.mxu0 %v766
    %787 = vmatprep.subr.mxu0 0.0
    %788 = vmatpush1.msra.mxu0 %v767
    %789 = vmatprep.subr.mxu0 0.0
    %790 = vmatpush1.msra.mxu0 %v768
    %791 = vmatprep.subr.mxu0 0.0
    %792 = vmatpush1.msra.mxu0 %v769
    %793 = vmatprep.subr.mxu0 0.0
    %794 = vmatpush1.msra.mxu0 %v770
    %795 = vmatprep.subr.mxu0 0.0
    %796 = vmatpush1.msra.mxu0 %v771
    %797 = vmatprep.subr.mxu0 0.0
    %798 = vmatpush1.msra.mxu0 %v772
    %799 = vmatprep.subr.mxu0 0.0
    %800 = vmatpush1.msra.mxu0 %v773
    %801 = vmatprep.subr.mxu0 0.0
    %802 = vmatpush1.msra.mxu0 %v774
    %803 = vmatprep.subr.mxu0 0.0
    %804 = vmatpush1.msra.mxu0 %v775
    %805 = vmatprep.subr.mxu0 0.0
    %806 = vmatpush1.msra.mxu0 %v776
    %807 = vmatprep.subr.mxu0 0.0
    %808 = vmatpush1.msra.mxu0 %v777
    %809 = vmatprep.subr.mxu0 0.0
    %810 = vmatpush1.msra.mxu0 %v778
    %811 = vmatprep.subr.mxu0 0.0
    %812 = vmatpush1.msra.mxu0 0.0
    %813 = vmatprep.subr.mxu0 0.0
    %814 = vmatpush1.msra.mxu0 0.0
    %815 = vmatprep.subr.mxu0 0.0
    %816 = vmatpush1.msra.mxu0 0.0
    %817 = vmatprep.subr.mxu0 0.0
    %818 = vmatpush1.msra.mxu0 0.0
    %819 = vmatprep.subr.mxu0 0.0
    %820 = vmatpush1.msra.mxu0 0.0
    %821 = vmatprep.subr.mxu0 0.0
    %822 = vmatpush1.msra.mxu0 0.0
    %823 = vmatprep.subr.mxu0 0.0
    %824 = vmatpush1.msra.mxu0 0.0
    %825 = vmatprep.subr.mxu0 0.0
    %826 = vmatpush1.msra.mxu0 0.0
    %827 = vmatprep.subr.mxu0 0.0
    %828 = vmatpush1.msra.mxu0 0.0
    %829 = vmatprep.subr.mxu0 0.0
    %830 = vmatpush1.msra.mxu0 0.0
    %831 = vmatprep.subr.mxu0 0.0
    %832 = vmatpush1.msra.mxu0 0.0
    %833 = vmatprep.subr.mxu0 0.0
    %834 = vmatpush1.msra.mxu0 0.0
    %835 = vmatprep.subr.mxu0 0.0
    %836 = vmatpush1.msra.mxu0 0.0
    %837 = vmatprep.subr.mxu0 0.0
    %838 = vmatpush1.msra.mxu0 0.0
    %839 = vmatprep.subr.mxu0 0.0
    %840 = vmatpush1.msra.mxu0 0.0
    %841 = vmatprep.subr.mxu0 0.0
    %842 = vmatpush1.msra.mxu0 0.0
    %843 = vmatprep.mubr.f32.mxu0 0.0
    %844 = vmatmul.mubr.f32.gmra.mrb[0].mxu0 %v761
    %v845 = vpop.f32.mrb[0].mxu0
    %v846 = vadd.f32 0.0, %v845
    %v847 = vpop.f32.mrb[0].mxu0
    %848 = vdwg.mxu0
    %849 = vmatprep.subr.mxu0 0.0
    %850 = vmatpush1.msra.mxu0 %v763
    %851 = vmatprep.subr.mxu0 0.0
    %852 = vmatpush1.msra.mxu0 %v764
    %853 = vmatprep.subr.mxu0 0.0
    %854 = vmatpush1.msra.mxu0 %v765
    %855 = vmatprep.subr.mxu0 0.0
    %856 = vmatpush1.msra.mxu0 %v766
    %857 = vmatprep.subr.mxu0 0.0
    %858 = vmatpush1.msra.mxu0 %v767
    %859 = vmatprep.subr.mxu0 0.0
    %860 = vmatpush1.msra.mxu0 %v768
    %861 = vmatprep.subr.mxu0 0.0
    %862 = vmatpush1.msra.mxu0 %v769
    %863 = vmatprep.subr.mxu0 0.0
    %864 = vmatpush1.msra.mxu0 %v770
    %865 = vmatprep.subr.mxu0 0.0
    %866 = vmatpush1.msra.mxu0 %v771
    %867 = vmatprep.subr.mxu0 0.0
    %868 = vmatpush1.msra.mxu0 %v772
    %869 = vmatprep.subr.mxu0 0.0
    %870 = vmatpush1.msra.mxu0 %v773
    %871 = vmatprep.subr.mxu0 0.0
    %872 = vmatpush1.msra.mxu0 %v774
    %873 = vmatprep.subr.mxu0 0.0
    %874 = vmatpush1.msra.mxu0 %v775
    %875 = vmatprep.subr.mxu0 0.0
    %876 = vmatpush1.msra.mxu0 %v776
    %877 = vmatprep.subr.mxu0 0.0
    %878 = vmatpush1.msra.mxu0 %v777
    %879 = vmatprep.subr.mxu0 0.0
    %880 = vmatpush1.msra.mxu0 %v778
    %881 = vmatprep.subr.mxu0 0.0
    %882 = vmatpush1.msra.mxu0 0.0
    %883 = vmatprep.subr.mxu0 0.0
    %884 = vmatpush1.msra.mxu0 0.0
    %885 = vmatprep.subr.mxu0 0.0
    %886 = vmatpush1.msra.mxu0 0.0
    %887 = vmatprep.subr.mxu0 0.0
    %888 = vmatpush1.msra.mxu0 0.0
    %889 = vmatprep.subr.mxu0 0.0
    %890 = vmatpush1.msra.mxu0 0.0
    %891 = vmatprep.subr.mxu0 0.0
    %892 = vmatpush1.msra.mxu0 0.0
    %893 = vmatprep.subr.mxu0 0.0
    %894 = vmatpush1.msra.mxu0 0.0
    %895 = vmatprep.subr.mxu0 0.0
    %896 = vmatpush1.msra.mxu0 0.0
    %897 = vmatprep.subr.mxu0 0.0
    %898 = vmatpush1.msra.mxu0 0.0
    %899 = vmatprep.subr.mxu0 0.0
    %900 = vmatpush1.msra.mxu0 0.0
    %901 = vmatprep.subr.mxu0 0.0
    %902 = vmatpush1.msra.mxu0 0.0
    %903 = vmatprep.subr.mxu0 0.0
    %904 = vmatpush1.msra.mxu0 0.0
    %905 = vmatprep.subr.mxu0 0.0
    %906 = vmatpush1.msra.mxu0 0.0
    %907 = vmatprep.subr.mxu0 0.0
    %908 = vmatpush1.msra.mxu0 0.0
    %909 = vmatprep.subr.mxu0 0.0
    %910 = vmatpush1.msra.mxu0 0.0
    %911 = vmatprep.subr.mxu0 0.0
    %912 = vmatpush1.msra.mxu0 0.0
    %913 = vmatprep.mubr.f32.mxu0 0.0
    %914 = vmatmul.mubr.f32.gmra.mrb[0].mxu0 %v762
    %v915 = vpop.f32.mrb[0].mxu0
    %v916 = vadd.f32 0.0, %v915
    %v917 = vpop.f32.mrb[0].mxu0
    %918 = vdwg.mxu0
    %v919 = vadd.f32 %v846, 1.0
    %v920 = vadd.f32 %v846, 0.0001
    %v921 = vrcp.pop %v920
    %v922 = vmul.f32 %v919, %v921
    %v923 = vlog2.pop %v922
    %v924 = vmul.f32 %v923, 0.6931472
    %v925 = vadd.f32 %v916, 1.0
    %v926 = vadd.f32 %v916, 0.0001
    %v927 = vrcp.pop %v926
    %v928 = vmul.f32 %v925, %v927
    %v929 = vlog2.pop %v928
    %v930 = vmul.f32 %v929, 0.6931472
    %v931 = vsub.f32 %v924, %v930
    %v932 = vld [vmem:[%s6] sm:$0xff]
    %v933 = vld [vmem:[%s6 + $0x8] sm:$0xff]
    %v934 = vld [vmem:[%s6 + $0x10] sm:$0xff]
    %v935 = vld [vmem:[%s6 + $0x18] sm:$0xff]
    %v936 = vld [vmem:[%s6 + $0x20] sm:$0xff]
    %v937 = vld [vmem:[%s6 + $0x28] sm:$0xff]
    %v938 = vld [vmem:[%s6 + $0x30] sm:$0xff]
    %v939 = vld [vmem:[%s6 + $0x38] sm:$0xff]
    %v940 = vld [vmem:[%s6 + $0x40] sm:$0xff]
    %v941 = vld [vmem:[%s6 + $0x48] sm:$0xff]
    %v942 = vld [vmem:[%s6 + $0x50] sm:$0xff]
    %v943 = vld [vmem:[%s6 + $0x58] sm:$0xff]
    %v944 = vld [vmem:[%s6 + $0x60] sm:$0xff]
    %v945 = vld [vmem:[%s6 + $0x68] sm:$0xff]
    %v946 = vld [vmem:[%s6 + $0x70] sm:$0xff]
    %v947 = vld [vmem:[%s6 + $0x78] sm:$0xff]
    %948 = vmatprep.subr.mxu0 0.0
    %949 = vmatpush1.msra.mxu0 %v932
    %950 = vmatprep.subr.mxu0 0.0
    %951 = vmatpush1.msra.mxu0 %v933
    %952 = vmatprep.subr.mxu0 0.0
    %953 = vmatpush1.msra.mxu0 %v934
    %954 = vmatprep.subr.mxu0 0.0
    %955 = vmatpush1.msra.mxu0 %v935
    %956 = vmatprep.subr.mxu0 0.0
    %957 = vmatpush1.msra.mxu0 %v936
    %958 = vmatprep.subr.mxu0 0.0
    %959 = vmatpush1.msra.mxu0 %v937
    %960 = vmatprep.subr.mxu0 0.0
    %961 = vmatpush1.msra.mxu0 %v938
    %962 = vmatprep.subr.mxu0 0.0
    %963 = vmatpush1.msra.mxu0 %v939
    %964 = vmatprep.subr.mxu0 0.0
    %965 = vmatpush1.msra.mxu0 %v940
    %966 = vmatprep.subr.mxu0 0.0
    %967 = vmatpush1.msra.mxu0 %v941
    %968 = vmatprep.subr.mxu0 0.0
    %969 = vmatpush1.msra.mxu0 %v942
    %970 = vmatprep.subr.mxu0 0.0
    %971 = vmatpush1.msra.mxu0 %v943
    %972 = vmatprep.subr.mxu0 0.0
    %973 = vmatpush1.msra.mxu0 %v944
    %974 = vmatprep.subr.mxu0 0.0
    %975 = vmatpush1.msra.mxu0 %v945
    %976 = vmatprep.subr.mxu0 0.0
    %977 = vmatpush1.msra.mxu0 %v946
    %978 = vmatprep.subr.mxu0 0.0
    %979 = vmatpush1.msra.mxu0 %v947
    %980 = vmatprep.subr.mxu0 0.0
    %981 = vmatpush1.msra.mxu0 0.0
    %982 = vmatprep.subr.mxu0 0.0
    %983 = vmatpush1.msra.mxu0 0.0
    %984 = vmatprep.subr.mxu0 0.0
    %985 = vmatpush1.msra.mxu0 0.0
    %986 = vmatprep.subr.mxu0 0.0
    %987 = vmatpush1.msra.mxu0 0.0
    %988 = vmatprep.subr.mxu0 0.0
    %989 = vmatpush1.msra.mxu0 0.0
    %990 = vmatprep.subr.mxu0 0.0
    %991 = vmatpush1.msra.mxu0 0.0
    %992 = vmatprep.subr.mxu0 0.0
    %993 = vmatpush1.msra.mxu0 0.0
    %994 = vmatprep.subr.mxu0 0.0
    %995 = vmatpush1.msra.mxu0 0.0
    %996 = vmatprep.subr.mxu0 0.0
    %997 = vmatpush1.msra.mxu0 0.0
    %998 = vmatprep.subr.mxu0 0.0
    %999 = vmatpush1.msra.mxu0 0.0
    %1000 = vmatprep.subr.mxu0 0.0
    %1001 = vmatpush1.msra.mxu0 0.0
    %1002 = vmatprep.subr.mxu0 0.0
    %1003 = vmatpush1.msra.mxu0 0.0
    %1004 = vmatprep.subr.mxu0 0.0
    %1005 = vmatpush1.msra.mxu0 0.0
    %1006 = vmatprep.subr.mxu0 0.0
    %1007 = vmatpush1.msra.mxu0 0.0
    %1008 = vmatprep.subr.mxu0 0.0
    %1009 = vmatpush1.msra.mxu0 0.0
    %1010 = vmatprep.subr.mxu0 0.0
    %1011 = vmatpush1.msra.mxu0 0.0
    %1012 = vmatprep.mubr.f32.mxu0 0.0
    %1013 = vmatmul.mubr.f32.gmra.mrb[0].mxu0 %v931
    %v1014 = vpop.f32.mrb[0].mxu0
    %v1015 = vadd.f32 0.0, %v1014
    %v1016 = vpop.f32.mrb[0].mxu0
    %1017 = vdwg.mxu0
    %1018 = vst [vmem:[%s7] sm:$0xff] %v1015
    %1019 = vst [vmem:[%s8] sm:$0xff] %v761
    %v1020 = vadd.f32 %v761, 1.0
    %v1021 = vadd.f32 %v761, 0.0001
    %v1022 = vrcp.pop %v1021
    %v1023 = vmul.f32 %v1020, %v1022
    %v1024 = vlog2.pop %v1023
    %v1025 = vmul.f32 %v1024, 0.6931472
    %v1026 = vadd.f32 %v762, 1.0
    %v1027 = vadd.f32 %v762, 0.0001
    %v1028 = vrcp.pop %v1027
    %v1029 = vmul.f32 %v1026, %v1028
    %v1030 = vlog2.pop %v1029
    %v1031 = vmul.f32 %v1030, 0.6931472
    %v1032 = vsub.f32 %v1025, %v1031
    %v1033 = vmax.f32 %v1032, 0.0
    %v1034 = vrsqrt.pop %v1033
    %v1035 = vmul.f32 %v1033, %v1034
    %vm1036 = vcmp.eq.f32.partialorder %v1033, inf
    %v1037 = vsel %vm1036, %v1033, %v1035
    %vm1038 = vcmp.eq.f32.partialorder %v1033, 0.0
    %v1039 = vand.u32 %v1033, 2147483648
    %v1040 = vsel %vm1038, %v1039, %v1037
    %v1041 = vsub.f32 %v1040, 1.0
    %1042 = vst [vmem:[%s9] sm:$0xff] %v1041
  $region37: #{prototype_chooser_forward.1} parent=0 // pred_fallthru
    _
  // Predicated region
  $region38: #{prototype_chooser_forward.1} parent=0 // pred_check
    _
  $region39: #{prototype_chooser_forward.1} parent=0 // pred_check_branch
    %1044 = sbr.rel (0) target = $region41
  $region40: #{prototype_chooser_forward.1} parent=0 // pred_region
    _
  $region41: #{prototype_chooser_forward.1} parent=0 // pred_fallthru
    _
  // Predicated region
  $region42: #{prototype_chooser_forward.1} parent=0 // pred_check
    _
  $region43: #{prototype_chooser_forward.1} parent=0 // pred_check_branch
    %1046 = sbr.rel (0) target = $region45
  $region44: #{prototype_chooser_forward.1} parent=0 // pred_region
    _
  $region45: #{prototype_chooser_forward.1} parent=0 // pred_fallthru
    _
  // Predicated region
  $region46: #{prototype_chooser_forward.1} parent=0 // pred_check
    _
  $region47: #{prototype_chooser_forward.1} parent=0 // pred_check_branch
    %1048 = sbr.rel (0) target = $region49
  $region48: #{prototype_chooser_forward.1} parent=0 // pred_region
    _
  $region49: #{prototype_chooser_forward.1} parent=0 // pred_fallthru
    _
  // Predicated region
  $region50: #{prototype_chooser_forward.1} parent=0 // pred_check
    _
  $region51: #{prototype_chooser_forward.1} parent=0 // pred_check_branch
    %1050 = sbr.rel (0) target = $region53
  $region52: #{prototype_chooser_forward.1} parent=0 // pred_region
    _
  $region53: #{prototype_chooser_forward.1} parent=0 // pred_fallthru
    _
  // Predicated region
  $region54: #{prototype_chooser_forward.1} parent=0 // pred_check
    _
  $region55: #{prototype_chooser_forward.1} parent=0 // pred_check_branch
    %1052 = sbr.rel (0) target = $region57
  $region56: #{prototype_chooser_forward.1} parent=0 // pred_region
    _
  $region57: #{prototype_chooser_forward.1} parent=0 // pred_fallthru
    _
  // Predicated region
  $region58: #{prototype_chooser_forward.1} parent=0 // pred_check
    _
  $region59: #{prototype_chooser_forward.1} parent=0 // pred_check_branch
    %1054 = sbr.rel (0) target = $region61
  $region60: #{prototype_chooser_forward.1} parent=0 // pred_region
    _
  $region61: #{prototype_chooser_forward.1} parent=0 // pred_fallthru
    _

</llo_original>
